<compile_context>
chip_gen: v6e
topology: v6e:2x2x1
jax: 0.10.0
libtpu: 0.0.40
codegen_flags: <defaults>
</compile_context>

<pallas_src>
import math

import jax
import jax.numpy as jnp
import numpy as np
from jax.experimental import pallas as pl
from jax.experimental.pallas import tpu as pltpu


# ---------------------------------------------------------------------------
# Pallas kernel: K-tiled conv-as-matmul with an f32 accumulator.
# ---------------------------------------------------------------------------
def _dcn_matmul_kernel(w_ref, col_ref, o_ref, acc_ref):
    # grid = (N, P_tiles, K_tiles); the trailing K axis is the reduction.
    @pl.when(pl.program_id(2) == 0)
    def _():
        acc_ref[...] = jnp.zeros_like(acc_ref)

    # bf16 x bf16 -> f32 on the MXU, accumulated in VMEM scratch.
    acc_ref[...] += jnp.dot(w_ref[...], col_ref[0],
                            preferred_element_type=jnp.float32)

    @pl.when(pl.program_id(2) == pl.num_programs(2) - 1)
    def _():
        o_ref[0] = acc_ref[...]


def _round_up(x, m):
    return (x + m - 1) // m * m


def _pick_tile(dim_pad, max_tile):
    """Largest multiple of 128 that divides dim_pad and is <= max_tile."""
    best = 128
    t = 256
    while t <= min(dim_pad, max_tile):
        if dim_pad % t == 0:
            best = t
        t += 128
    return best


# ---------------------------------------------------------------------------
# XLA glue: sampling positions, 4-corner gather, bilinear + mask combine.
# ---------------------------------------------------------------------------
def _build_deform_col(x, offset, mask, kh, kw, stride, padding, dilation,
                      deform_groups):
    """Returns the pre-combined im2col slab (N, C*k*k, Hout*Wout), Hout, Wout.

    The DCNv2 modulation mask is folded into the bilinear weights, and the
    per-deform-group weights are broadcast over channels (never materialized
    per channel) before the single fused combine.
    """
    # TODO(synk): the per-element data-dependent corner gather has no clean
    # Pallas TPU equivalent, so the gather/combine stays in XLA; the Pallas
    # kernel consumes the single pre-combined bf16 slab.
    N, C, H, W = x.shape
    KK = kh * kw
    sh, sw = stride
    ph, pw = padding
    dh, dw = dilation
    Hout = (H + 2 * ph - dh * (kh - 1) - 1) // sh + 1
    Wout = (W + 2 * pw - dw * (kw - 1) - 1) // sw + 1
    P = Hout * Wout
    dg = deform_groups
    cpg = C // dg

    off = offset.reshape(N, dg, KK, 2, Hout, Wout).astype(jnp.float32)
    off_y = off[:, :, :, 0]                      # (N, dg, KK, Hout, Wout)
    off_x = off[:, :, :, 1]
    msk = mask.reshape(N, dg, KK, Hout, Wout).astype(jnp.float32)

    hgrid, wgrid = jnp.meshgrid(jnp.arange(Hout), jnp.arange(Wout),
                                indexing="ij")
    ki, kj = jnp.meshgrid(jnp.arange(kh), jnp.arange(kw), indexing="ij")
    ki = ki.reshape(KK)
    kj = kj.reshape(KK)

    base_y = (hgrid[None, None, None] * sh - ph
              + ki[None, None, :, None, None] * dh).astype(jnp.float32)
    base_x = (wgrid[None, None, None] * sw - pw
              + kj[None, None, :, None, None] * dw).astype(jnp.float32)
    py = base_y + off_y                           # (N, dg, KK, Hout, Wout)
    px = base_x + off_x

    # mmcv semantics: a sample is zero unless p is strictly inside
    # (-1, H) x (-1, W); individual out-of-range corners contribute zero.
    valid = ((py > -1) & (px > -1) & (py < H) & (px < W)).astype(jnp.float32)
    h_low = jnp.floor(py)
    w_low = jnp.floor(px)
    lh = py - h_low
    lw = px - w_low
    hh = 1.0 - lh
    hw = 1.0 - lw
    hl = h_low.astype(jnp.int32)
    wl = w_low.astype(jnp.int32)
    hi = hl + 1
    wi = wl + 1

    def cvalid(a, b):
        return ((a >= 0) & (a <= H - 1) & (b >= 0)
                & (b <= W - 1)).astype(jnp.float32)

    # Modulation mask folded into the bilinear weights; kept at
    # (N, dg, 1, KK, P) so the channel broadcast is never materialized.
    mv = msk * valid
    bw_tl = (hh * hw * cvalid(hl, wl) * mv).reshape(N, dg, 1, KK, P)
    bw_tr = (hh * lw * cvalid(hl, wi) * mv).reshape(N, dg, 1, KK, P)
    bw_bl = (lh * hw * cvalid(hi, wl) * mv).reshape(N, dg, 1, KK, P)
    bw_br = (lh * lw * cvalid(hi, wi) * mv).reshape(N, dg, 1, KK, P)

    x_r = x.reshape(N, dg, cpg, H * W).astype(jnp.float32)

    def gather(a, b):  # clamped corner gather -> (N, dg, cpg, KK, P)
        idx = (jnp.clip(a, 0, H - 1) * W
               + jnp.clip(b, 0, W - 1)).reshape(N, dg, 1, KK * P)
        idx = jnp.broadcast_to(idx, (N, dg, cpg, KK * P))
        vals = jnp.take_along_axis(x_r, idx, axis=-1)
        return vals.reshape(N, dg, cpg, KK, P)

    v_tl = gather(hl, wl)
    v_tr = gather(hl, wi)
    v_bl = gather(hi, wl)
    v_br = gather(hi, wi)

    col = bw_tl * v_tl + bw_tr * v_tr + bw_bl * v_bl + bw_br * v_br
    return col.reshape(N, C * KK, P), Hout, Wout


# ---------------------------------------------------------------------------
# Wrapper: padding, tiling, pallas_call.
# ---------------------------------------------------------------------------
def modulated_deform_conv2d_pallas(x, offset, mask, weight, bias, stride,
                                   padding, dilation, groups, deform_groups,
                                   *, max_tp=512, max_tk=512):
    assert groups == 1, "only groups=1 implemented"
    N, C, H, W = x.shape
    C_out, _, kh, kw = weight.shape
    K = C * kh * kw

    col, Hout, Wout = _build_deform_col(x, offset, mask, kh, kw, stride,
                                        padding, dilation, deform_groups)
    P = Hout * Wout

    # Pad lane (spatial) and reduction (C*k*k) axes to multiples of 128 for
    # (8,128)-aligned tiles and lane-dense output stores; pad C_out to a
    # sublane multiple.  Zero padding contributes nothing to the matmul.
    P_pad = _round_up(P, 128)
    K_pad = _round_up(K, 128)
    Co_pad = _round_up(C_out, 8)

    TP = _pick_tile(P_pad, max_tp)
    TK = _pick_tile(K_pad, max_tk)

    # bf16 data movement, f32 accumulation inside the kernel.
    col_p = jnp.pad(col.astype(jnp.bfloat16),
                    ((0, 0), (0, K_pad - K), (0, P_pad - P)))
    w_flat = weight.reshape(C_out, K).astype(jnp.bfloat16)
    w_p = jnp.pad(w_flat, ((0, Co_pad - C_out), (0, K_pad - K)))

    grid = (N, P_pad // TP, K_pad // TK)

    out = pl.pallas_call(
        _dcn_matmul_kernel,
        out_shape=jax.ShapeDtypeStruct((N, Co_pad, P_pad), jnp.float32),
        grid_spec=pltpu.PrefetchScalarGridSpec(
            num_scalar_prefetch=0,
            grid=grid,
            in_specs=[
                pl.BlockSpec((Co_pad, TK), lambda n, p, k: (0, k)),
                pl.BlockSpec((1, TK, TP), lambda n, p, k: (n, k, p)),
            ],
            out_specs=pl.BlockSpec((1, Co_pad, TP), lambda n, p, k: (n, 0, p)),
            scratch_shapes=[pltpu.VMEM((Co_pad, TP), jnp.float32)],
        ),
        compiler_params=pltpu.CompilerParams(
            dimension_semantics=("parallel", "parallel", "arbitrary")),
    )(w_p, col_p)

    out = out[:, :C_out, :P].reshape(N, C_out, Hout, Wout)
    if bias is not None:
        out = out + bias[None, :, None, None]
    return out


# ---------------------------------------------------------------------------
# Pure-JAX f32 reference (same column builder, einsum instead of Pallas).
# ---------------------------------------------------------------------------
def _reference(x, offset, mask, weight, bias, stride, padding, dilation,
               groups, deform_groups):
    N, C, H, W = x.shape
    C_out, _, kh, kw = weight.shape
    col, Hout, Wout = _build_deform_col(x, offset, mask, kh, kw, stride,
                                        padding, dilation, deform_groups)
    w_flat = weight.reshape(C_out, C * kh * kw).astype(jnp.float32)
    out = jnp.einsum("ok,nkp->nop", w_flat, col,
                     precision=jax.lax.Precision.HIGHEST)
    out = out.reshape(N, C_out, Hout, Wout)
    if bias is not None:
        out = out + bias[None, :, None, None]
    return out


class DeformConvWarpNorm:
    """JAX port of the PyTorch DeformConvWarpNorm module."""

    def __init__(self, in_channels, out_channels, kernel_size=3, stride=1,
                 padding=1, dilation=1, groups=1, deform_groups=1, bias=False,
                 *, key):
        self.in_channels = in_channels
        self.out_channels = out_channels
        self.kernel = kernel_size
        self.stride = (stride, stride)
        self.padding = (padding, padding)
        self.dilation = (dilation, dilation)
        self.groups = groups
        self.deform_groups = deform_groups
        n = in_channels * kernel_size * kernel_size
        stdv = 1.0 / math.sqrt(n)
        self.weight = jax.random.uniform(
            key, (out_channels, in_channels // groups, kernel_size ** 2),
            minval=-stdv, maxval=stdv, dtype=jnp.float32)
        self.bias = jnp.zeros((out_channels,), jnp.float32) if bias else None

    def _normalized_weight(self):
        # softmax over the k*k kernel dimension, then reshape to (O, I, k, k)
        w = jax.nn.softmax(self.weight, axis=2)
        return w.reshape(self.out_channels, self.in_channels // self.groups,
                         self.kernel, self.kernel)

    def __call__(self, x, offset, mask):
        return modulated_deform_conv2d_pallas(
            x, offset, mask, self._normalized_weight(), self.bias,
            self.stride, self.padding, self.dilation, self.groups,
            self.deform_groups)

    def reference(self, x, offset, mask):
        return _reference(
            x, offset, mask, self._normalized_weight(), self.bias,
            self.stride, self.padding, self.dilation, self.groups,
            self.deform_groups)


if __name__ == "__main__":
    key = jax.random.PRNGKey(0)
    k_w, k_x, k_off, k_m = jax.random.split(key, 4)

    N, C_in, C_out, H, W, k = 2, 4, 8, 16, 16, 3
    dg = 1

    mod = DeformConvWarpNorm(C_in, C_out, kernel_size=k, stride=1, padding=1,
                             dilation=1, groups=1, deform_groups=dg,
                             bias=False, key=k_w)

    x = jax.random.normal(k_x, (N, C_in, H, W), dtype=jnp.float32)
    offset = 0.5 * jax.random.normal(k_off, (N, dg * 2 * k * k, H, W),
                                     dtype=jnp.float32)
    mask = jax.nn.sigmoid(
        jax.random.normal(k_m, (N, dg * k * k, H, W), dtype=jnp.float32))

    out = mod(x, offset, mask)
    out = jax.block_until_ready(out)
    assert out.shape == (N, C_out, H, W), out.shape

    ref = jax.block_until_ready(mod.reference(x, offset, mask))
    # bf16 data movement with f32 accumulation vs. an f32 reference.
    np.testing.assert_allclose(np.asarray(out), np.asarray(ref),
                               rtol=1e-2, atol=2e-2)

    print("KERNEL_OK")
</pallas_src>

<mosaic_0001>
module attributes {stable_mosaic.version = 11 : i64} {
  func.func @_dcn_matmul_kernel(%arg0: i32, %arg1: i32, %arg2: i32, %arg3: memref<8x128xbf16, #tpu.memory_space<vmem>>, %arg4: memref<1x128x256xbf16, #tpu.memory_space<vmem>>, %arg5: memref<1x8x256xf32, #tpu.memory_space<vmem>>, %arg6: memref<8x256xf32, #tpu.memory_space<vmem>>) attributes {dimension_semantics = [#tpu.dimension_semantics<parallel>, #tpu.dimension_semantics<parallel>, #tpu.dimension_semantics<arbitrary>], iteration_bounds = array<i64: 2, 1, 1>, scalar_prefetch = 0 : i64, scratch_operands = 1 : i64, tpu.core_type = #tpu.core_type<tc>, window_params = [{transform_indices = @transform_0, window_bounds = array<i64: 8, 128>}, {transform_indices = @transform_1, window_bounds = array<i64: 1, 128, 256>}, {transform_indices = @transform_2, window_bounds = array<i64: 1, 8, 256>}]} {
    %c0_i32 = arith.constant 0 : i32
    %0 = arith.cmpi eq, %arg2, %c0_i32 : i32
    %1 = arith.extui %0 : i1 to i32
    %c0_i32_0 = arith.constant 0 : i32
    %2 = arith.cmpi ne, %1, %c0_i32_0 : i32
    scf.if %2 {
      %cst_11 = arith.constant 0.000000e+00 : f32
      %13 = vector.broadcast %cst_11 : f32 to vector<8x256xf32>
      %c0_12 = arith.constant 0 : index
      %c0_13 = arith.constant 0 : index
      %14 = vector.load %arg6[%c0_12, %c0_13] : memref<8x256xf32, #tpu.memory_space<vmem>>, vector<8x256xf32>
      tpu.vector_store %arg6[%c0_12, %c0_13], %13 {strides = array<i32>} : memref<8x256xf32, #tpu.memory_space<vmem>>, vector<8x256xf32>,
    } else {
    }
    %c0 = arith.constant 0 : index
    %c0_1 = arith.constant 0 : index
    %3 = vector.load %arg6[%c0, %c0_1] : memref<8x256xf32, #tpu.memory_space<vmem>>, vector<8x256xf32>
    %c0_2 = arith.constant 0 : index
    %c0_3 = arith.constant 0 : index
    %4 = vector.load %arg3[%c0_2, %c0_3] : memref<8x128xbf16, #tpu.memory_space<vmem>>, vector<8x128xbf16>
    %c0_4 = arith.constant 0 : index
    %c0_5 = arith.constant 0 : index
    %c0_6 = arith.constant 0 : index
    %5 = vector.load %arg4[%c0_4, %c0_5, %c0_6] : memref<1x128x256xbf16, #tpu.memory_space<vmem>>, vector<1x128x256xbf16>
    %6 = vector.shape_cast %5 : vector<1x128x256xbf16> to vector<128x256xbf16>
    %cst = arith.constant dense<0.000000e+00> : vector<8x256xf32>
    %7 = tpu.matmul %4, %6, %cst {dimension_numbers = #tpu.dot_dimension_numbers<[1], [0], [0], [1], [0, 0, 1, 1], [], []>} : vector<8x128xbf16>, vector<128x256xbf16>, vector<8x256xf32> -> vector<8x256xf32>
    %8 = arith.addf %3, %7 : vector<8x256xf32>
    %c0_7 = arith.constant 0 : index
    %c0_8 = arith.constant 0 : index
    %9 = vector.load %arg6[%c0_7, %c0_8] : memref<8x256xf32, #tpu.memory_space<vmem>>, vector<8x256xf32>
    tpu.vector_store %arg6[%c0_7, %c0_8], %8 {strides = array<i32>} : memref<8x256xf32, #tpu.memory_space<vmem>>, vector<8x256xf32>,
    %c0_i32_9 = arith.constant 0 : i32
    %10 = arith.cmpi eq, %arg2, %c0_i32_9 : i32
    %11 = arith.extui %10 : i1 to i32
    %c0_i32_10 = arith.constant 0 : i32
    %12 = arith.cmpi ne, %11, %c0_i32_10 : i32
    scf.if %12 {
      %c0_11 = arith.constant 0 : index
      %c0_12 = arith.constant 0 : index
      %13 = vector.load %arg6[%c0_11, %c0_12] : memref<8x256xf32, #tpu.memory_space<vmem>>, vector<8x256xf32>
      %c0_13 = arith.constant 0 : index
      %c0_14 = arith.constant 0 : index
      %c0_15 = arith.constant 0 : index
      %14 = vector.load %arg5[%c0_13, %c0_14, %c0_15] : memref<1x8x256xf32, #tpu.memory_space<vmem>>, vector<1x8x256xf32>
      %15 = vector.shape_cast %14 : vector<1x8x256xf32> to vector<8x256xf32>
      %16 = vector.shape_cast %13 : vector<8x256xf32> to vector<1x8x256xf32>
      tpu.vector_store %arg5[%c0_13, %c0_14, %c0_15], %16 {strides = array<i32>} : memref<1x8x256xf32, #tpu.memory_space<vmem>>, vector<1x8x256xf32>,
    } else {
    }
    return
  }
  func.func @transform_0(%arg0: i32, %arg1: i32, %arg2: i32) -> (i32, i32) {
    %c0_i32 = arith.constant 0 : i32
    %c0_i32_0 = arith.constant 0 : i32
    return %c0_i32, %arg2 : i32, i32
  }
  func.func @transform_1(%arg0: i32, %arg1: i32, %arg2: i32) -> (i32, i32, i32) {
    %c0_i32 = arith.constant 0 : i32
    return %arg0, %arg2, %arg1 : i32, i32, i32
  }
  func.func @transform_2(%arg0: i32, %arg1: i32, %arg2: i32) -> (i32, i32, i32) {
    %c0_i32 = arith.constant 0 : i32
    %c0_i32_0 = arith.constant 0 : i32
    return %arg0, %c0_i32, %arg1 : i32, i32, i32
  }
}

</mosaic_0001>

<llo_original>
// kernel: tpu_custom_call.1
$region0: #{tpu_custom_call.1}
  #allocation0 [shape = 'u32[]', space=smem, size = 0x4, offset = 0x4, fixed_abs, tag = 'smem constant byte address 0x4 - core index']
  #allocation1 [shape = 'u32[144,128]{1,0:T(1,128)}', space=vmem, size = 0x12000, scoped, tag = 'internal scratch']
  #allocation2 [shape = 'f32[8,256]{1,0:T(8,128)}', space=vmem, size = 0x2000, scoped, tag = 'scratch operand']
  %s0 = inlined_call_operand.hbm [shape: bf16[8,128], index: 0, kind: input, shape index: {}]
  %s1 = inlined_call_operand.hbm [shape: bf16[2,128,256], index: 1, kind: input, shape index: {}]
  %s2 = inlined_call_operand.hbm [shape: f32[2,8,256], index: 2, kind: output, shape index: {}]
  %s3 = sld [smem:[#allocation0]]
  $region57: #{tpu_custom_call.1} parent=0
    _
  %s5 = ssub.s32 1, %s3
  %s6 = scalar_select 0, %s5, %s3
  $region1: #{tpu_custom_call.1} parent=0
    #allocation3 [shape = 'u8[2048]{0}', space=vmem, size = 0x800, scoped, tag = 'input window, operand 0, single buffered']
    #allocation4 [shape = 's32[2]{0}', space=sflag, size = 0x8, scoped, tag = 'scoped memory for tpu_custom_call.1']
    #allocation5 [shape = 's32[2]{0}', space=sflag, size = 0x8, scoped, tag = 'scoped memory for tpu_custom_call.1']
    #allocation6 [shape = 'u8[131072]{0}', space=vmem, size = 0x20000, scoped, tag = 'input window, operand 1']
    #allocation7 [shape = 's32[2]{0}', space=sflag, size = 0x8, scoped, tag = 'scoped memory for tpu_custom_call.1']
    #allocation8 [shape = 'u8[16384]{0}', space=vmem, size = 0x4000, scoped, tag = 'output window, operand 0']
    %7 = vsyncpa [#allocation4], 0
    %8 = vsyncpa [#allocation7], 0
    %s9 = scalar_lea.sflag [#allocation7], 1
    %10 = vsyncpa %s9, 0
    %11 = vsyncpa [#allocation5], 0
    %s12 = scalar_lea.sflag [#allocation5], 1
    %13 = vsyncpa %s12, 0
    loop: start=0, step=1, limit=4
    $region2: #{tpu_custom_call.1} parent=1 // loop_pre_header
      _
    $region3: #{tpu_custom_call.1} parent=1 // loop_header
      %s15 = sphi 0, %s19
      %p16 = scmp.ge.s32.totalorder %s15, 4
      %s22 = sphi 0, %s41
      %s23 = sphi 0, %s37
      %s24 = sphi 0, %s33
      %s25 = sphi 0, %s22
      %s26 = sphi 0, %s23
      %s27 = sphi 0, %s24
      %s28 = sphi 0, %s25
      %s29 = sphi 0, %s26
      %s30 = sphi 0, %s27
      %s44 = sphi 0, %s46
      %s47 = sphi 0, %s44
      %s48 = sphi 0, %s47
      %s64 = sphi 0, %s48
      %s74 = sphi 0, %s76
      %s77 = sphi 0, %s74
      %s78 = sphi 0, %s77
      %s94 = sphi 0, %s78
      %s102 = sphi 0, %s104
      %s105 = sphi 0, %s102
      %s106 = sphi 0, %s105
      %s122 = sphi 0, %s106
    $region4: #{tpu_custom_call.1} parent=1 // loop_header_branch
      %18 = sbr.rel (%p16) target = $region8
    $region5: #{tpu_custom_call.1} parent=1 // loop_body
      %s20 = ssub.s32 %s15, 1
      %s21 = ssub.s32 %s15, 2
      %s31 = sadd.s32 1, %s24
      %p32 = scmp.ge.s32.totalorder %s31, 1
      %s33 = scalar_select %p32, 0, %s31
      %s34 = sadd.s32 1, %s23
      %s35 = scalar_select %p32, %s34, %s23
      %p36 = scmp.ge.s32.totalorder %s35, 1
      %s37 = scalar_select %p36, 0, %s35
      %s38 = sadd.s32 1, %s22
      %s39 = scalar_select %p36, %s38, %s22
      %p40 = scmp.ge.s32.totalorder %s39, 2
      %s41 = scalar_select %p40, 0, %s39
      %s42 = ssub.s32 %s24, %s33
      %p43 = scmp.eq.s32.totalorder %s42, 0
      %s45 = sadd.s32 %s44, 1
      %s46 = scalar_select %p43, %s44, %s45
      %p49 = pneg %p43
      %p50 = scmp.eq.s32.totalorder %s15, 1
      %p51 = por %p49, %p50
      %p52 = scmp.ne.s32.totalorder %s44, %s47
      %p53 = scmp.eq.s32.totalorder %s15, 0
      %p54 = por %p52, %p53
      %p55 = scmp.ne.s32.totalorder %s44, %s47
      %p56 = scmp.eq.s32.totalorder %s20, 1
      %p57 = por %p55, %p56
      %p58 = scmp.ne.s32.totalorder %s47, %s48
      %p59 = scmp.eq.s32.totalorder %s20, 0
      %p60 = por %p58, %p59
      %p61 = scmp.ne.s32.totalorder %s47, %s48
      %p62 = scmp.eq.s32.totalorder %s21, 1
      %p63 = por %p61, %p62
      %p65 = scmp.ne.s32.totalorder %s48, %s64
      %p66 = scmp.eq.s32.totalorder %s21, 0
      %p67 = por %p65, %p66
      %s68 = ssub.s32 %s22, %s41
      %s69 = ssub.s32 %s24, %s33
      %s70 = sor.u32 %s68, %s69
      %s71 = ssub.s32 %s23, %s37
      %s72 = sor.u32 %s70, %s71
      %p73 = scmp.eq.s32.totalorder %s72, 0
      %s75 = sadd.s32 %s74, 1
      %s76 = scalar_select %p73, %s74, %s75
      %p79 = pneg %p73
      %p80 = scmp.eq.s32.totalorder %s15, 1
      %p81 = por %p79, %p80
      %p82 = scmp.ne.s32.totalorder %s74, %s77
      %p83 = scmp.eq.s32.totalorder %s15, 0
      %p84 = por %p82, %p83
      %p85 = scmp.ne.s32.totalorder %s74, %s77
      %p86 = scmp.eq.s32.totalorder %s20, 1
      %p87 = por %p85, %p86
      %p88 = scmp.ne.s32.totalorder %s77, %s78
      %p89 = scmp.eq.s32.totalorder %s20, 0
      %p90 = por %p88, %p89
      %p91 = scmp.ne.s32.totalorder %s77, %s78
      %p92 = scmp.eq.s32.totalorder %s21, 1
      %p93 = por %p91, %p92
      %p95 = scmp.ne.s32.totalorder %s78, %s94
      %p96 = scmp.eq.s32.totalorder %s21, 0
      %p97 = por %p95, %p96
      %s98 = ssub.s32 %s22, %s41
      %s99 = ssub.s32 %s23, %s37
      %s100 = sor.u32 %s98, %s99
      %p101 = scmp.eq.s32.totalorder %s100, 0
      %s103 = sadd.s32 %s102, 1
      %s104 = scalar_select %p101, %s102, %s103
      %p107 = pneg %p101
      %p108 = scmp.eq.s32.totalorder %s15, 1
      %p109 = por %p107, %p108
      %p110 = scmp.ne.s32.totalorder %s102, %s105
      %p111 = scmp.eq.s32.totalorder %s15, 0
      %p112 = por %p110, %p111
      %p113 = scmp.ne.s32.totalorder %s102, %s105
      %p114 = scmp.eq.s32.totalorder %s20, 1
      %p115 = por %p113, %p114
      %p116 = scmp.ne.s32.totalorder %s105, %s106
      %p117 = scmp.eq.s32.totalorder %s20, 0
      %p118 = por %p116, %p117
      %p119 = scmp.ne.s32.totalorder %s105, %s106
      %p120 = scmp.eq.s32.totalorder %s21, 1
      %p121 = por %p119, %p120
      %p123 = scmp.ne.s32.totalorder %s106, %s122
      %p124 = scmp.eq.s32.totalorder %s21, 0
      %p125 = por %p123, %p124
      %p126 = scmp.le.s32.totalorder 1, %s15
      %p127 = scmp.lt.s32.totalorder %s15, 3
      %p128 = pnand %p126, %p127
      %p129 = pneg %p128
      // Predicated region
      $region9: #{tpu_custom_call.1} parent=5 // pred_check
        _
      $region10: #{tpu_custom_call.1} parent=5 // pred_check_branch
        %131 = sbr.rel (%p128) target = $region12
      $region11: #{tpu_custom_call.1} parent=5 // pred_region
        %s132 = ssub.s32 %s15, 1
        // Predicated region
        $region13: #{tpu_custom_call.1} parent=11 // pred_check
          %p133 = pneg %p60
        $region14: #{tpu_custom_call.1} parent=11 // pred_check_branch
          %135 = sbr.rel (%p133) target = $region16
        $region15: #{tpu_custom_call.1} parent=11 // pred_region
          %s137 = ssub.s32 64, 64
          %138 = vsyncadd [#allocation4], %s137
          %s139 = smul.addr %s27, 64
          %s140 = scalar_lea.hbm %s0, %s139
          %s142 = sshll.u32 [#allocation3], 4
          %s143 = int_to_ptr.vmem [resolvable:$true] %s142
          %145 = dma.hbm_to_vmem [thread:$0]  %s140, 64, %s143, [#allocation4]
        $region16: #{tpu_custom_call.1} parent=11 // pred_fallthru
          _
      $region12: #{tpu_custom_call.1} parent=5 // pred_fallthru
        _
      %p146 = scmp.lt.s32.totalorder %s15, 2
      // Predicated region
      $region17: #{tpu_custom_call.1} parent=5 // pred_check
        %p147 = pneg %p146
      $region18: #{tpu_custom_call.1} parent=5 // pred_check_branch
        %149 = sbr.rel (%p147) target = $region20
      $region19: #{tpu_custom_call.1} parent=5 // pred_region
        // Predicated region
        $region21: #{tpu_custom_call.1} parent=19 // pred_check
          %p150 = pneg %p84
        $region22: #{tpu_custom_call.1} parent=19 // pred_check_branch
          %152 = sbr.rel (%p150) target = $region24
        $region23: #{tpu_custom_call.1} parent=19 // pred_region
          %s153 = sand.u32 %s74, 1
          %s154 = scalar_lea.sflag [#allocation7], %s153
          %s155 = sand.u32 %s74, 1
          %s156 = smul.addr %s155, 128
          %s157 = scalar_lea.vmem [#allocation6], %s156
          %s158 = smul.u32 16, %s24
          %s159 = smul.u32 2, %s23
          %s161 = ssub.s32 2048, 2048
          %162 = vsyncadd %s154, %s161
          %s163 = smul.addr %s158, 2
          %s164 = sadd.s32 %s159, %s163
          %s165 = smul.addr %s22, 32
          %s166 = sadd.s32 %s164, %s165
          %s167 = smul.addr %s166, 64
          %s168 = scalar_lea.hbm %s1, %s167
          %s169 = sshll.u32 %s157, 4
          %s170 = int_to_ptr.vmem [resolvable:$true] %s169
          %175 = dma.hbm_to_vmem [thread:$0]  %s168, 2048, %s170, %s154, 128, 128, 8
        $region24: #{tpu_custom_call.1} parent=19 // pred_fallthru
          _
      $region20: #{tpu_custom_call.1} parent=5 // pred_fallthru
        _
      %p176 = scmp.le.s32.totalorder 1, %s15
      %p177 = scmp.lt.s32.totalorder %s15, 3
      %p178 = pnand %p176, %p177
      %p179 = pneg %p178
      // Predicated region
      $region25: #{tpu_custom_call.1} parent=5 // pred_check
        _
      $region26: #{tpu_custom_call.1} parent=5 // pred_check_branch
        %181 = sbr.rel (%p178) target = $region28
      $region27: #{tpu_custom_call.1} parent=5 // pred_region
        %s182 = ssub.s32 %s15, 1
        // Predicated region
        $region29: #{tpu_custom_call.1} parent=27 // pred_check
          %p183 = pneg %p60
        $region30: #{tpu_custom_call.1} parent=27 // pred_check_branch
          %185 = sbr.rel (%p183) target = $region32
        $region31: #{tpu_custom_call.1} parent=27 // pred_region
          %186 = dma.done [#allocation4], 64
        $region32: #{tpu_custom_call.1} parent=27 // pred_fallthru
          _
        %s187 = sand.u32 %s77, 1
        %s188 = scalar_lea.sflag [#allocation7], %s187
        %s189 = sand.u32 %s77, 1
        %s190 = smul.addr %s189, 128
        %s191 = scalar_lea.vmem [#allocation6], %s190
        // Predicated region
        $region33: #{tpu_custom_call.1} parent=27 // pred_check
          %p192 = pneg %p90
        $region34: #{tpu_custom_call.1} parent=27 // pred_check_branch
          %194 = sbr.rel (%p192) target = $region36
        $region35: #{tpu_custom_call.1} parent=27 // pred_region
          %195 = dma.done %s188, 2048
        $region36: #{tpu_custom_call.1} parent=27 // pred_fallthru
          _
        %p196 = pneg %p60
        %p197 = pneg %p57
        %s198 = sand.u32 %s77, 1
        %s199 = scalar_lea.sflag [#allocation7], %s198
        %s200 = sand.u32 %s77, 1
        %s201 = smul.addr %s200, 128
        %s202 = scalar_lea.vmem [#allocation6], %s201
        %p203 = pneg %p90
        %p204 = pneg %p87
        %p205 = pneg %p118
        %p206 = pneg %p115
        %s207 = sand.u32 %s105, 1
        %s208 = scalar_lea.sflag [#allocation5], %s207
        %s209 = sand.u32 %s105, 1
        %s210 = smul.addr %s209, 16
        %s211 = scalar_lea.vmem [#allocation8], %s210
        %s212 = smul.u32 16, %s27
        %s213 = smul.u32 2, %s26
        %s214 = smul.u32 2, %s26
        %p216 = scmp.eq.s32.totalorder %s27, 0
        // Predicated region
        $region37: #{tpu_custom_call.1} parent=27 // pred_check
          %p217 = pneg %p216
        $region38: #{tpu_custom_call.1} parent=27 // pred_check_branch
          %219 = sbr.rel (%p217) target = $region40
        $region39: #{tpu_custom_call.1} parent=27 // pred_region
          %220 = vst [vmem:[#allocation2] sm:$0xff] 0.0
          %221 = vst [vmem:[#allocation2 + $0x8] sm:$0xff] 0.0
        $region40: #{tpu_custom_call.1} parent=27 // pred_fallthru
          _
        %v222 = vld [vmem:[#allocation2] sm:$0xff]
        %v223 = vld [vmem:[#allocation2 + $0x8] sm:$0xff]
        %v224 = vld [vmem:[#allocation3] sm:$0xf]
        %v225 = vld [vmem:[%s191] sm:$0xff]
        %v226 = vld [vmem:[%s191 + $0x8] sm:$0xff]
        %v227 = vld [vmem:[%s191 + $0x10] sm:$0xff]
        %v228 = vld [vmem:[%s191 + $0x18] sm:$0xff]
        %v229 = vld [vmem:[%s191 + $0x20] sm:$0xff]
        %v230 = vld [vmem:[%s191 + $0x28] sm:$0xff]
        %v231 = vld [vmem:[%s191 + $0x30] sm:$0xff]
        %v232 = vld [vmem:[%s191 + $0x38] sm:$0xff]
        %v233 = vld [vmem:[%s191 + $0x40] sm:$0xff]
        %v234 = vld [vmem:[%s191 + $0x48] sm:$0xff]
        %v235 = vld [vmem:[%s191 + $0x50] sm:$0xff]
        %v236 = vld [vmem:[%s191 + $0x58] sm:$0xff]
        %v237 = vld [vmem:[%s191 + $0x60] sm:$0xff]
        %v238 = vld [vmem:[%s191 + $0x68] sm:$0xff]
        %v239 = vld [vmem:[%s191 + $0x70] sm:$0xff]
        %v240 = vld [vmem:[%s191 + $0x78] sm:$0xff]
        %v257 = vunpack.c.l.b16 %v225
        %v258 = vunpack.c.h.b16 %v225
        %v259 = vunpack.c.l.b16 %v226
        %v260 = vunpack.c.h.b16 %v226
        %v261 = vunpack.c.l.b16 %v227
        %v262 = vunpack.c.h.b16 %v227
        %v263 = vunpack.c.l.b16 %v228
        %v264 = vunpack.c.h.b16 %v228
        %v265 = vunpack.c.l.b16 %v229
        %v266 = vunpack.c.h.b16 %v229
        %v267 = vunpack.c.l.b16 %v230
        %v268 = vunpack.c.h.b16 %v230
        %v269 = vunpack.c.l.b16 %v231
        %v270 = vunpack.c.h.b16 %v231
        %v271 = vunpack.c.l.b16 %v232
        %v272 = vunpack.c.h.b16 %v232
        %v273 = vunpack.c.l.b16 %v233
        %v274 = vunpack.c.h.b16 %v233
        %v275 = vunpack.c.l.b16 %v234
        %v276 = vunpack.c.h.b16 %v234
        %v277 = vunpack.c.l.b16 %v235
        %v278 = vunpack.c.h.b16 %v235
        %v279 = vunpack.c.l.b16 %v236
        %v280 = vunpack.c.h.b16 %v236
        %v281 = vunpack.c.l.b16 %v237
        %v282 = vunpack.c.h.b16 %v237
        %v283 = vunpack.c.l.b16 %v238
        %v284 = vunpack.c.h.b16 %v238
        %v285 = vunpack.c.l.b16 %v239
        %v286 = vunpack.c.h.b16 %v239
        %v287 = vunpack.c.l.b16 %v240
        %v288 = vunpack.c.h.b16 %v240
        %v289 = vpack.c.b16 %v259, %v257
        %v290 = vpack.c.b16 %v260, %v258
        %v291 = vpack.c.b16 %v263, %v261
        %v292 = vpack.c.b16 %v264, %v262
        %v293 = vpack.c.b16 %v267, %v265
        %v294 = vpack.c.b16 %v268, %v266
        %v295 = vpack.c.b16 %v271, %v269
        %v296 = vpack.c.b16 %v272, %v270
        %v297 = vpack.c.b16 %v275, %v273
        %v298 = vpack.c.b16 %v276, %v274
        %v299 = vpack.c.b16 %v279, %v277
        %v300 = vpack.c.b16 %v280, %v278
        %v301 = vpack.c.b16 %v283, %v281
        %v302 = vpack.c.b16 %v284, %v282
        %v303 = vpack.c.b16 %v287, %v285
        %v304 = vpack.c.b16 %v288, %v286
        %321 = vmatprep.subr.bf16.mxu0 %v304
        %322 = vmatpush1.bf16.msra.mxu0 %v303
        %323 = vmatprep.subr.bf16.mxu0 %v302
        %324 = vmatpush1.bf16.msra.mxu0 %v301
        %325 = vmatprep.subr.bf16.mxu0 %v300
        %326 = vmatpush1.bf16.msra.mxu0 %v299
        %327 = vmatprep.subr.bf16.mxu0 %v298
        %328 = vmatpush1.bf16.msra.mxu0 %v297
        %329 = vmatprep.subr.bf16.mxu0 %v296
        %330 = vmatpush1.bf16.msra.mxu0 %v295
        %331 = vmatprep.subr.bf16.mxu0 %v294
        %332 = vmatpush1.bf16.msra.mxu0 %v293
        %333 = vmatprep.subr.bf16.mxu0 %v292
        %334 = vmatpush1.bf16.msra.mxu0 %v291
        %335 = vmatprep.subr.bf16.mxu0 %v290
        %336 = vmatpush1.bf16.msra.mxu0 %v289
        %337 = vmatprep.subr.bf16.mxu0 0
        %338 = vmatpush2.bf16.msra.mxu0 0
        %339 = vmatprep.subr.bf16.mxu0 0
        %340 = vmatpush2.bf16.msra.mxu0 0
        %341 = vmatprep.subr.bf16.mxu0 0
        %342 = vmatpush2.bf16.msra.mxu0 0
        %343 = vmatprep.subr.bf16.mxu0 0
        %344 = vmatpush2.bf16.msra.mxu0 0
        %345 = vmatprep.subr.bf16.mxu0 0
        %346 = vmatpush2.bf16.msra.mxu0 0
        %347 = vmatprep.subr.bf16.mxu0 0
        %348 = vmatpush2.bf16.msra.mxu0 0
        %349 = vmatprep.subr.bf16.mxu0 0
        %350 = vmatpush2.bf16.msra.mxu0 0
        %351 = vmatprep.subr.bf16.mxu0 0
        %352 = vmatpush2.bf16.msra.mxu0 0
        %353 = vmatprep.mubr.bf16.mxu0 0
        %354 = vmatmul.mubr.bf16.gmra.mxu0 %v224
        %v355 = vpop.f32.mrf.mxu0
        %v356 = vadd.f32 0.0, %v355
        %v357 = vpop.f32.mrf.mxu0
        %v358 = vadd.f32 0.0, %v357
        %v359 = vpop.f32.mrf.mxu0
        %v360 = vpop.f32.mrf.mxu0
        %361 = vdwg.mxu0
        %v362 = vadd.f32 %v222, %v356
        %v363 = vadd.f32 %v223, %v358
        %364 = vst [vmem:[#allocation2] sm:$0xff] %v362
        %365 = vst [vmem:[#allocation2 + $0x8] sm:$0xff] %v363
        // Predicated region
        $region41: #{tpu_custom_call.1} parent=27 // pred_check
          %p366 = pneg %p216
        $region42: #{tpu_custom_call.1} parent=27 // pred_check_branch
          %368 = sbr.rel (%p366) target = $region44
        $region43: #{tpu_custom_call.1} parent=27 // pred_region
          %v369 = vld [vmem:[#allocation2] sm:$0xff]
          %v370 = vld [vmem:[#allocation2 + $0x8] sm:$0xff]
          %371 = vst [vmem:[%s211] sm:$0xff] %v369
          %372 = vst [vmem:[%s211 + $0x8] sm:$0xff] %v370
        $region44: #{tpu_custom_call.1} parent=27 // pred_fallthru
          _
        %s373 = sand.u32 %s105, 1
        %s374 = scalar_lea.sflag [#allocation5], %s373
        %s375 = sand.u32 %s105, 1
        %s376 = smul.addr %s375, 16
        %s377 = scalar_lea.vmem [#allocation8], %s376
        // Predicated region
        $region45: #{tpu_custom_call.1} parent=27 // pred_check
          %p378 = pneg %p115
        $region46: #{tpu_custom_call.1} parent=27 // pred_check_branch
          %380 = sbr.rel (%p378) target = $region48
        $region47: #{tpu_custom_call.1} parent=27 // pred_region
          %s381 = smul.u32 2, %s26
          %s383 = ssub.s32 256, 256
          %384 = vsyncadd %s374, %s383
          %s385 = smul.addr %s25, 2
          %s386 = sadd.s32 %s381, %s385
          %s387 = smul.addr %s386, 128
          %s388 = scalar_lea.hbm %s2, %s387
          %s390 = sshll.u32 %s377, 4
          %s391 = int_to_ptr.vmem [resolvable:$true] %s390
          %393 = dma.vmem_to_hbm [thread:$0]  %s391, 256, %s388, %s374
        $region48: #{tpu_custom_call.1} parent=27 // pred_fallthru
          _
      $region28: #{tpu_custom_call.1} parent=5 // pred_fallthru
        _
      %p394 = scmp.le.s32.totalorder 2, %s15
      // Predicated region
      $region49: #{tpu_custom_call.1} parent=5 // pred_check
        %p395 = pneg %p394
      $region50: #{tpu_custom_call.1} parent=5 // pred_check_branch
        %397 = sbr.rel (%p395) target = $region52
      $region51: #{tpu_custom_call.1} parent=5 // pred_region
        %s398 = ssub.s32 %s15, 2
        // Predicated region
        $region53: #{tpu_custom_call.1} parent=51 // pred_check
          %p399 = pneg %p121
        $region54: #{tpu_custom_call.1} parent=51 // pred_check_branch
          %401 = sbr.rel (%p399) target = $region56
        $region55: #{tpu_custom_call.1} parent=51 // pred_region
          %s402 = sand.u32 %s106, 1
          %s403 = scalar_lea.sflag [#allocation5], %s402
          %s404 = sand.u32 %s106, 1
          %s405 = smul.addr %s404, 16
          %s406 = scalar_lea.vmem [#allocation8], %s405
          %407 = dma.done %s403, 256
        $region56: #{tpu_custom_call.1} parent=51 // pred_fallthru
          _
      $region52: #{tpu_custom_call.1} parent=5 // pred_fallthru
        _
    $region6: #{tpu_custom_call.1} parent=1 // loop_footer
      %s19 = sadd.s32 1, %s15
    $region7: #{tpu_custom_call.1} parent=1 // loop_footer_branch
      %14 = sbr.rel target = $region3
    $region8: #{tpu_custom_call.1} parent=1 // loop_exit
      _
    %408 = vsyncpa [#allocation4], 1
    %s409 = scalar_lea.sflag [#allocation4], 1
    %410 = vsyncpa %s409, 1
    %411 = vsyncpa [#allocation7], 1
    %s412 = scalar_lea.sflag [#allocation7], 1
    %413 = vsyncpa %s412, 1
    %414 = vsyncpa [#allocation5], 1
    %s415 = scalar_lea.sflag [#allocation5], 1
    %416 = vsyncpa %s415, 1

</llo_original>
